<compile_context>
chip_gen: v5e
topology: v5e:2x2
jax: 0.10.0
libtpu: 0.0.40
codegen_flags: <defaults>
</compile_context>

<pallas_src>
import functools

import jax
import jax.numpy as jnp
from jax.experimental import pallas as pl
from jax.experimental.pallas import tpu as pltpu


def _cdiv(a: int, b: int) -> int:
    return -(-a // b)


def _round_up(x: int, m: int) -> int:
    return ((x + m - 1) // m) * m


def _chip_kind() -> str:
    try:
        return jax.devices()[0].device_kind.lower()
    except Exception:
        return ""


# ----------------------------------------------------------------------------
# Pallas kernel: one (tT, tU, tV) logits tile of  tanh(pre_e[t] + pre_d[u]) @ W2 + b2
# ----------------------------------------------------------------------------
def _joint_kernel(pre_e_ref, pre_d_ref, w2_ref, b2_ref, out_ref, h_ref, *,
                  w2_resident: bool, compute_dtype):
    # pre_e_ref : (1, tT, I) bf16         pre_d_ref : (1, tU, I) bf16 (b1 folded in)
    # w2_ref    : (I, Vp) bf16 resident   OR (I, tV) streamed per V tile
    # b2_ref    : (1, Vp) f32  resident   OR (1, tV) f32
    # out_ref   : (1, tT, tU, tV)         h_ref     : (tT*tU, I) bf16 VMEM scratch
    tT, tU, tV = out_ref.shape[1], out_ref.shape[2], out_ref.shape[3]

    # h-slab reuse is only valid because V (grid axis 3) is the innermost,
    # sequentially iterated ("arbitrary") axis: the slab built at vi == 0 is
    # consumed by every V tile of the same (b, t-tile, u-tile).  Do not reorder.
    @pl.when(pl.program_id(3) == 0)
    def _():
        pe = pre_e_ref[0].astype(compute_dtype)           # (tT, I)
        pd = pre_d_ref[0].astype(compute_dtype)           # (tU, I)
        h = jnp.tanh(pe[:, None, :] + pd[None, :, :])     # (tT, tU, I)
        h_ref[...] = h.reshape(tT * tU, h.shape[-1]).astype(h_ref.dtype)

    if w2_resident and w2_ref.shape[1] != tV:
        # Slice the current V tile out of the VMEM-resident weight/bias slabs
        # (lane offsets are tV-aligned; tV is a multiple of 128 whenever nV > 1).
        v0 = pl.multiple_of(pl.program_id(3) * tV, tV)
        w2_blk = w2_ref[:, pl.ds(v0, tV)]
        b2_blk = b2_ref[:, pl.ds(v0, tV)]
    else:
        w2_blk = w2_ref[...]
        b2_blk = b2_ref[...]

    # Flattened 2D GEMM on the MXU: bf16 x bf16 with f32 accumulation.
    acc = jnp.dot(h_ref[...], w2_blk, preferred_element_type=jnp.float32)
    acc = acc + b2_blk                                     # (tT*tU, tV) + (1, tV)
    out_ref[0] = acc.reshape(tT, tU, tV).astype(out_ref.dtype)


# ----------------------------------------------------------------------------
# Wrapper: JointNet forward.  enc_state (B, T, He), dec_state (B, U, Hd) -> (B, T, U, V)
# ----------------------------------------------------------------------------
def joint_net_pallas(enc_state, dec_state, w1, b1, w2, b2, *, joint="concat",
                     softmax=False, tile_t=128, tile_u=16, tile_v=1024,
                     out_dtype=jnp.bfloat16):
    # TODO(synk): only the 3-D training path (B,T,H)x(B,U,H) is implemented; the
    # PyTorch 1-D / 2-D eval-time input path is not.
    B, T, He = enc_state.shape
    Bd, U, Hd = dec_state.shape
    assert B == Bd
    I = w1.shape[-1]
    V = w2.shape[-1]

    if joint == "concat":
        # concat([e, d]) @ W1 == e @ W1[:He] + d @ W1[He:]
        assert w1.shape[0] == He + Hd
        w1e, w1d = w1[:He, :], w1[He:, :]
    elif joint == "sum":
        # (e + d) @ W1 == e @ W1 + d @ W1 -> same kernel, shared first-layer weight.
        assert He == Hd and w1.shape[0] == He
        w1e, w1d = w1, w1
    else:
        raise NotImplementedError(joint)

    bf16, f32 = jnp.bfloat16, jnp.float32

    # --- First Linear hoisted to XLA (negligible FLOPs vs the T*U*I*V GEMM); bf16
    #     operands with f32 accumulation, b1 folded into the decoder side. ---------
    pre_e = jnp.einsum("bth,hi->bti", enc_state.astype(bf16), w1e.astype(bf16),
                       preferred_element_type=f32)
    pre_d = jnp.einsum("buh,hi->bui", dec_state.astype(bf16), w1d.astype(bf16),
                       preferred_element_type=f32) + b1.astype(f32)
    pre_e = pre_e.astype(bf16)
    pre_d = pre_d.astype(bf16)

    # --- Per-generation knobs (conservative fallbacks if the kind is unknown). ----
    kind = _chip_kind()
    if "v7" in kind or "7x" in kind:
        vmem_cap = 52 << 20           # 64 MiB / TC on v7x: leave compiler headroom
    elif "v5" in kind or "v6" in kind:
        vmem_cap = 100 << 20          # 128 MiB parts
    else:
        vmem_cap = 64 << 20
    # bf16 VPU/EUP exists on v6e/v7x; keep the f32 tanh path on v5e / older / unknown.
    compute_dtype = bf16 if ("v6" in kind or "v7" in kind or "7x" in kind) else f32

    # --- Tile selection: sublane-aligned T/U tiles, lane-dense V tiles.  Each block
    #     dim in the last-two positions is a multiple of (8, 128) or the full dim. --
    tile_t = max(8, _round_up(tile_t, 8))
    tile_u = max(8, _round_up(tile_u, 8))
    tile_v = max(128, _round_up(tile_v, 128))
    osz = jnp.dtype(out_dtype).itemsize

    def _estimate(tT, tU, tV):
        nV = _cdiv(V, tV)
        Vp = nV * tV
        # Constant block index -> W2/b2 are DMA'd once, but the default pipeline
        # still allocates 2 buffers; budget for both copies.
        w2_res_bytes = 2 * (I * Vp * 2 + Vp * 4)
        resident = w2_res_bytes <= min(24 << 20, vmem_cap // 3)
        w2_bytes = w2_res_bytes if resident else 2 * (I * tV * 2 + tV * 4)
        total = (2 * tT * I * 2 + 2 * tU * I * 2 + w2_bytes
                 + 2 * tT * tU * tV * osz + tT * tU * I * 2)
        return total, Vp, nV, resident

    tT = T if T <= tile_t else tile_t
    tU = U if U <= tile_u else tile_u
    tV = V if V <= tile_v else tile_v
    total, Vp, nV, w2_resident = _estimate(tT, tU, tV)
    while total > vmem_cap:                       # shrink to fit the VMEM budget
        if tT > 8 and tT % 16 == 0:
            tT //= 2
        elif tU > 8 and tU % 16 == 0:
            tU //= 2
        elif tV > 128 and tV % 256 == 0:
            tV //= 2
        else:
            break
        total, Vp, nV, w2_resident = _estimate(tT, tU, tV)

    nT, nU = _cdiv(T, tT), _cdiv(U, tU)
    grid = (B, nT, nU, nV)

    # Weights/bias are padded to Vp (= nV * tV) so in-kernel V slicing stays in
    # bounds; this is tiny (weights only) -- the logits output is NOT padded.
    if Vp != V:
        w2 = jnp.pad(w2, ((0, 0), (0, Vp - V)))
        b2 = jnp.pad(b2, ((0, Vp - V),))
    w2_k = w2.astype(bf16)
    b2_k = b2.astype(f32).reshape(1, Vp)

    if w2_resident:
        # Constant block index: Pallas skips the re-DMA on every grid step, so W2/b2
        # are streamed from HBM exactly once per core.
        w2_spec = pl.BlockSpec((I, Vp), lambda b, ti, ui, vi: (0, 0))
        b2_spec = pl.BlockSpec((1, Vp), lambda b, ti, ui, vi: (0, 0))
    else:
        w2_spec = pl.BlockSpec((I, tV), lambda b, ti, ui, vi: (0, vi))
        b2_spec = pl.BlockSpec((1, tV), lambda b, ti, ui, vi: (0, vi))

    vmem_limit = max(32 << 20, min(vmem_cap, int(total * 1.25) + (4 << 20)))

    cost = pl.CostEstimate(
        flops=2 * B * (nT * tT) * (nU * tU) * I * (nV * tV),
        transcendentals=B * (nT * tT) * (nU * tU) * I,
        bytes_accessed=int(B * T * U * V * osz + B * T * I * 2
                           + B * nT * U * I * 2 + I * Vp * 2),
    )

    kernel = functools.partial(_joint_kernel, w2_resident=w2_resident,
                               compute_dtype=compute_dtype)

    out = pl.pallas_call(
        kernel,
        out_shape=jax.ShapeDtypeStruct((B, T, U, V), out_dtype),
        grid=grid,
        in_specs=[
            pl.BlockSpec((1, tT, I), lambda b, ti, ui, vi: (b, ti, 0)),
            pl.BlockSpec((1, tU, I), lambda b, ti, ui, vi: (b, ui, 0)),
            w2_spec,
            b2_spec,
        ],
        out_specs=pl.BlockSpec((1, tT, tU, tV), lambda b, ti, ui, vi: (b, ti, ui, vi)),
        scratch_shapes=[pltpu.VMEM((tT * tU, I), jnp.bfloat16)],
        compiler_params=pltpu.CompilerParams(
            # V MUST remain the innermost, sequential ("arbitrary") axis: the h slab
            # built at vi == 0 is reused by every V tile of the same (b, ti, ui).
            dimension_semantics=("parallel", "parallel", "parallel", "arbitrary"),
            vmem_limit_bytes=vmem_limit,
        ),
        cost_estimate=cost,
    )(pre_e, pre_d, w2_k, b2_k)

    if softmax:
        # TODO(synk): the PyTorch module calls an undefined self.softmax; apply a
        # plain softmax in f32 outside the kernel for parity with intent.
        out = jax.nn.softmax(out.astype(f32), axis=-1)
    return out


# ----------------------------------------------------------------------------
# Plain-JAX f32 reference that mirrors the PyTorch repeat + cat + MLP exactly.
# ----------------------------------------------------------------------------
def joint_net_reference(enc_state, dec_state, w1, b1, w2, b2):
    B, T, He = enc_state.shape
    _, U, Hd = dec_state.shape
    e = jnp.broadcast_to(enc_state[:, :, None, :], (B, T, U, He))
    d = jnp.broadcast_to(dec_state[:, None, :, :], (B, T, U, Hd))
    concat = jnp.concatenate([e, d], axis=-1)
    h = jnp.tanh(concat @ w1 + b1)
    return h @ w2 + b2


# ----------------------------------------------------------------------------
if __name__ == "__main__":
    key = jax.random.PRNGKey(0)
    k = jax.random.split(key, 10)

    joint_fn = jax.jit(functools.partial(joint_net_pallas, joint="concat"))

    # --- Case 1: aligned small shapes (B, T, U, He/Hd, inner, vocab) ------------
    B, T, U = 2, 8, 8
    H_ENC, H_DEC = 32, 32           # input_size = H_ENC + H_DEC = 64
    INNER, VOCAB = 64, 128

    enc_state = jax.random.normal(k[0], (B, T, H_ENC), jnp.float32)
    dec_state = jax.random.normal(k[1], (B, U, H_DEC), jnp.float32)
    # nn.Linear weights stored transposed: (in_features, out_features)
    w1 = 0.05 * jax.random.normal(k[2], (H_ENC + H_DEC, INNER), jnp.float32)
    b1 = 0.05 * jax.random.normal(k[3], (INNER,), jnp.float32)
    w2 = 0.05 * jax.random.normal(k[4], (INNER, VOCAB), jnp.float32)
    b2 = 0.05 * jax.random.normal(k[5], (VOCAB,), jnp.float32)

    out = joint_fn(enc_state, dec_state, w1, b1, w2, b2)
    jax.block_until_ready(out)
    ref = joint_net_reference(enc_state, dec_state, w1, b1, w2, b2)
    assert out.shape == (B, T, U, VOCAB)
    assert out.dtype == jnp.bfloat16
    assert bool(jnp.allclose(out.astype(jnp.float32), ref, atol=2e-2, rtol=2e-2)), \
        float(jnp.max(jnp.abs(out.astype(jnp.float32) - ref)))

    # --- Case 2: ragged shapes (exercise odd dims: U=6, vocab=16) ---------------
    U2, VOCAB2 = 6, 16
    dec_state2 = jax.random.normal(k[6], (B, U2, H_DEC), jnp.float32)
    w2b = 0.05 * jax.random.normal(k[7], (INNER, VOCAB2), jnp.float32)
    b2b = 0.05 * jax.random.normal(k[8], (VOCAB2,), jnp.float32)

    out2 = joint_fn(enc_state, dec_state2, w1, b1, w2b, b2b)
    jax.block_until_ready(out2)
    ref2 = joint_net_reference(enc_state, dec_state2, w1, b1, w2b, b2b)
    assert out2.shape == (B, T, U2, VOCAB2)
    assert bool(jnp.allclose(out2.astype(jnp.float32), ref2, atol=2e-2, rtol=2e-2)), \
        float(jnp.max(jnp.abs(out2.astype(jnp.float32) - ref2)))

    print("KERNEL_OK")
</pallas_src>

<mosaic_0001>
module attributes {stable_mosaic.version = 11 : i64} {
  func.func @_joint_kernel(%arg0: i32, %arg1: i32, %arg2: i32, %arg3: i32, %arg4: memref<1x8x64xbf16, #tpu.memory_space<vmem>>, %arg5: memref<1x8x64xbf16, #tpu.memory_space<vmem>>, %arg6: memref<64x128xbf16, #tpu.memory_space<vmem>>, %arg7: memref<1x128xf32, #tpu.memory_space<vmem>>, %arg8: memref<1x8x8x128xbf16, #tpu.memory_space<vmem>>, %arg9: memref<64x64xbf16, #tpu.memory_space<vmem>>) attributes {dimension_semantics = [#tpu.dimension_semantics<parallel>, #tpu.dimension_semantics<parallel>, #tpu.dimension_semantics<parallel>, #tpu.dimension_semantics<arbitrary>], iteration_bounds = array<i64: 2, 1, 1, 1>, scalar_prefetch = 0 : i64, scratch_operands = 1 : i64, tpu.core_type = #tpu.core_type<tc>, window_params = [{transform_indices = @transform_0, window_bounds = array<i64: 1, 8, 64>}, {transform_indices = @transform_1, window_bounds = array<i64: 1, 8, 64>}, {pipeline_mode = #tpu.pipeline_mode<synchronous>, transform_indices = @transform_2, window_bounds = array<i64: 64, 128>}, {pipeline_mode = #tpu.pipeline_mode<synchronous>, transform_indices = @transform_3, window_bounds = array<i64: 1, 128>}, {transform_indices = @transform_4, window_bounds = array<i64: 1, 8, 8, 128>}]} {
    %c0_i32 = arith.constant 0 : i32
    %0 = arith.cmpi eq, %arg3, %c0_i32 : i32
    %1 = arith.extui %0 : i1 to i32
    %c0_i32_0 = arith.constant 0 : i32
    %2 = arith.cmpi ne, %1, %c0_i32_0 : i32
    scf.if %2 {
      %c0_10 = arith.constant 0 : index
      %c0_11 = arith.constant 0 : index
      %c0_12 = arith.constant 0 : index
      %14 = vector.load %arg4[%c0_10, %c0_11, %c0_12] : memref<1x8x64xbf16, #tpu.memory_space<vmem>>, vector<1x8x64xbf16>
      %15 = vector.shape_cast %14 : vector<1x8x64xbf16> to vector<8x64xbf16>
      %16 = arith.extf %15 : vector<8x64xbf16> to vector<8x64xf32>
      %c0_13 = arith.constant 0 : index
      %c0_14 = arith.constant 0 : index
      %c0_15 = arith.constant 0 : index
      %17 = vector.load %arg5[%c0_13, %c0_14, %c0_15] : memref<1x8x64xbf16, #tpu.memory_space<vmem>>, vector<1x8x64xbf16>
      %18 = vector.shape_cast %17 : vector<1x8x64xbf16> to vector<8x64xbf16>
      %19 = arith.extf %18 : vector<8x64xbf16> to vector<8x64xf32>
      %20 = vector.shape_cast %16 : vector<8x64xf32> to vector<8x1x64xf32>
      %21 = vector.shape_cast %19 : vector<8x64xf32> to vector<1x8x64xf32>
      %22 = vector.broadcast %20 : vector<8x1x64xf32> to vector<8x8x64xf32>
      %23 = vector.broadcast %21 : vector<1x8x64xf32> to vector<8x8x64xf32>
      %24 = arith.addf %22, %23 : vector<8x8x64xf32>
      %25 = math.tanh %24 : vector<8x8x64xf32>
      %26 = vector.shape_cast %25 : vector<8x8x64xf32> to vector<64x64xf32>
      %27 = arith.truncf %26 : vector<64x64xf32> to vector<64x64xbf16>
      %c0_16 = arith.constant 0 : index
      %c0_17 = arith.constant 0 : index
      %28 = vector.load %arg9[%c0_16, %c0_17] : memref<64x64xbf16, #tpu.memory_space<vmem>>, vector<64x64xbf16>
      tpu.vector_store %arg9[%c0_16, %c0_17], %27 {strides = array<i32>} : memref<64x64xbf16, #tpu.memory_space<vmem>>, vector<64x64xbf16>,
    } else {
    }
    %c0 = arith.constant 0 : index
    %c0_1 = arith.constant 0 : index
    %3 = vector.load %arg6[%c0, %c0_1] : memref<64x128xbf16, #tpu.memory_space<vmem>>, vector<64x128xbf16>
    %c0_2 = arith.constant 0 : index
    %c0_3 = arith.constant 0 : index
    %4 = vector.load %arg7[%c0_2, %c0_3] : memref<1x128xf32, #tpu.memory_space<vmem>>, vector<1x128xf32>
    %c0_4 = arith.constant 0 : index
    %c0_5 = arith.constant 0 : index
    %5 = vector.load %arg9[%c0_4, %c0_5] : memref<64x64xbf16, #tpu.memory_space<vmem>>, vector<64x64xbf16>
    %cst = arith.constant dense<0.000000e+00> : vector<64x128xf32>
    %6 = tpu.matmul %5, %3, %cst {dimension_numbers = #tpu.dot_dimension_numbers<[1], [0], [0], [1], [0, 0, 1, 1], [], []>} : vector<64x64xbf16>, vector<64x128xbf16>, vector<64x128xf32> -> vector<64x128xf32>
    %7 = vector.broadcast %4 : vector<1x128xf32> to vector<64x128xf32>
    %8 = arith.addf %6, %7 : vector<64x128xf32>
    %9 = vector.shape_cast %8 : vector<64x128xf32> to vector<8x8x128xf32>
    %10 = arith.truncf %9 : vector<8x8x128xf32> to vector<8x8x128xbf16>
    %c0_6 = arith.constant 0 : index
    %c0_7 = arith.constant 0 : index
    %c0_8 = arith.constant 0 : index
    %c0_9 = arith.constant 0 : index
    %11 = vector.load %arg8[%c0_6, %c0_7, %c0_8, %c0_9] : memref<1x8x8x128xbf16, #tpu.memory_space<vmem>>, vector<1x8x8x128xbf16>
    %12 = vector.shape_cast %11 : vector<1x8x8x128xbf16> to vector<8x8x128xbf16>
    %13 = vector.shape_cast %10 : vector<8x8x128xbf16> to vector<1x8x8x128xbf16>
    tpu.vector_store %arg8[%c0_6, %c0_7, %c0_8, %c0_9], %13 {strides = array<i32>} : memref<1x8x8x128xbf16, #tpu.memory_space<vmem>>, vector<1x8x8x128xbf16>,
    return
  }
  func.func @transform_0(%arg0: i32, %arg1: i32, %arg2: i32, %arg3: i32) -> (i32, i32, i32) {
    %c0_i32 = arith.constant 0 : i32
    %c0_i32_0 = arith.constant 0 : i32
    return %arg0, %arg1, %c0_i32 : i32, i32, i32
  }
  func.func @transform_1(%arg0: i32, %arg1: i32, %arg2: i32, %arg3: i32) -> (i32, i32, i32) {
    %c0_i32 = arith.constant 0 : i32
    %c0_i32_0 = arith.constant 0 : i32
    return %arg0, %arg2, %c0_i32 : i32, i32, i32
  }
  func.func @transform_2(%arg0: i32, %arg1: i32, %arg2: i32, %arg3: i32) -> (i32, i32) {
    %c0_i32 = arith.constant 0 : i32
    %c0_i32_0 = arith.constant 0 : i32
    %c0_i32_1 = arith.constant 0 : i32
    return %c0_i32, %c0_i32_0 : i32, i32
  }
  func.func @transform_3(%arg0: i32, %arg1: i32, %arg2: i32, %arg3: i32) -> (i32, i32) {
    %c0_i32 = arith.constant 0 : i32
    %c0_i32_0 = arith.constant 0 : i32
    %c0_i32_1 = arith.constant 0 : i32
    return %c0_i32, %c0_i32_0 : i32, i32
  }
  func.func @transform_4(%arg0: i32, %arg1: i32, %arg2: i32, %arg3: i32) -> (i32, i32, i32, i32) {
    %c0_i32 = arith.constant 0 : i32
    return %arg0, %arg1, %arg2, %arg3 : i32, i32, i32, i32
  }
}

</mosaic_0001>

<llo_original>
// kernel: joint_net_pallas.1
$region0: #{joint_net_pallas.1}
  #allocation0 [shape = 'u32[]', space=smem, size = 0x4, offset = 0x4, fixed_abs, tag = 'smem constant byte address 0x4 - core index']
  #allocation1 [shape = 'u32[72,128]{1,0:T(1,128)}', space=vmem, size = 0x9000, scoped, tag = 'internal scratch']
  #allocation2 [shape = 'bf16[64,64]{1,0:T(8,128)(2,1)}', space=vmem, size = 0x4000, scoped, tag = 'scratch operand']
  %s0 = inlined_call_operand.vmem [shape: bf16[2,8,64], index: 0, kind: input, shape index: {}]
  %s1 = inlined_call_operand.vmem [shape: bf16[2,8,64], index: 1, kind: input, shape index: {}]
  %s2 = inlined_call_operand.vmem [shape: bf16[64,128], index: 2, kind: input, shape index: {}]
  %s3 = inlined_call_operand.vmem [shape: f32[1,128], index: 3, kind: input, shape index: {}]
  %s4 = inlined_call_operand.hbm [shape: bf16[2,8,8,128], index: 4, kind: output, shape index: {}]
  %s5 = sld [smem:[#allocation0]]
  $region53: #{joint_net_pallas.1} parent=0
    _
  %s7 = ssub.s32 1, %s5
  %s8 = scalar_select 0, %s7, %s5
  $region1: #{joint_net_pallas.1} parent=0
    #allocation3 [shape = 'u8[32768]{0}', space=vmem, size = 0x8000, scoped, tag = 'output window, operand 0']
    #allocation4 [shape = 's32[2]{0}', space=sflag, size = 0x8, scoped, tag = 'scoped memory for joint_net_pallas.1']
    %9 = vsyncpa [#allocation4], 0
    %s10 = scalar_lea.sflag [#allocation4], 1
    %11 = vsyncpa %s10, 0
    loop: start=0, step=1, limit=4
    $region2: #{joint_net_pallas.1} parent=1 // loop_pre_header
      _
    $region3: #{joint_net_pallas.1} parent=1 // loop_header
      %s13 = sphi 0, %s17
      %p14 = scmp.ge.s32.totalorder %s13, 4
      %s20 = sphi 0, %s46
      %s21 = sphi 0, %s42
      %s22 = sphi 0, %s38
      %s23 = sphi 0, %s34
      %s24 = sphi 0, %s20
      %s25 = sphi 0, %s21
      %s26 = sphi 0, %s22
      %s27 = sphi 0, %s23
      %s28 = sphi 0, %s24
      %s29 = sphi 0, %s25
      %s30 = sphi 0, %s26
      %s31 = sphi 0, %s27
      %s51 = sphi 0, %s53
      %s54 = sphi 0, %s51
      %s55 = sphi 0, %s54
      %s71 = sphi 0, %s55
      %s79 = sphi 0, %s81
      %s82 = sphi 0, %s79
      %s83 = sphi 0, %s82
      %s99 = sphi 0, %s83
      %s103 = sphi 0, %s103
      %s105 = sphi 0, %s103
      %s106 = sphi 0, %s105
      %s120 = sphi 0, %s106
      %s124 = sphi 0, %s124
      %s126 = sphi 0, %s124
      %s127 = sphi 0, %s126
      %s141 = sphi 0, %s127
      %s153 = sphi 0, %s155
      %s156 = sphi 0, %s153
      %s157 = sphi 0, %s156
      %s173 = sphi 0, %s157
    $region4: #{joint_net_pallas.1} parent=1 // loop_header_branch
      %16 = sbr.rel (%p14) target = $region8
    $region5: #{joint_net_pallas.1} parent=1 // loop_body
      %s18 = ssub.s32 %s13, 1
      %s19 = ssub.s32 %s13, 2
      %s32 = sadd.s32 1, %s23
      %p33 = scmp.ge.s32.totalorder %s32, 1
      %s34 = scalar_select %p33, 0, %s32
      %s35 = sadd.s32 1, %s22
      %s36 = scalar_select %p33, %s35, %s22
      %p37 = scmp.ge.s32.totalorder %s36, 1
      %s38 = scalar_select %p37, 0, %s36
      %s39 = sadd.s32 1, %s21
      %s40 = scalar_select %p37, %s39, %s21
      %p41 = scmp.ge.s32.totalorder %s40, 1
      %s42 = scalar_select %p41, 0, %s40
      %s43 = sadd.s32 1, %s20
      %s44 = scalar_select %p41, %s43, %s20
      %p45 = scmp.ge.s32.totalorder %s44, 2
      %s46 = scalar_select %p45, 0, %s44
      %s47 = ssub.s32 %s20, %s46
      %s48 = ssub.s32 %s21, %s42
      %s49 = sor.u32 %s47, %s48
      %p50 = scmp.eq.s32.totalorder %s49, 0
      %s52 = sadd.s32 %s51, 1
      %s53 = scalar_select %p50, %s51, %s52
      %p56 = pneg %p50
      %p57 = scmp.eq.s32.totalorder %s13, 1
      %p58 = por %p56, %p57
      %p59 = scmp.ne.s32.totalorder %s51, %s54
      %p60 = scmp.eq.s32.totalorder %s13, 0
      %p61 = por %p59, %p60
      %p62 = scmp.ne.s32.totalorder %s51, %s54
      %p63 = scmp.eq.s32.totalorder %s18, 1
      %p64 = por %p62, %p63
      %p65 = scmp.ne.s32.totalorder %s54, %s55
      %p66 = scmp.eq.s32.totalorder %s18, 0
      %p67 = por %p65, %p66
      %p68 = scmp.ne.s32.totalorder %s54, %s55
      %p69 = scmp.eq.s32.totalorder %s19, 1
      %p70 = por %p68, %p69
      %p72 = scmp.ne.s32.totalorder %s55, %s71
      %p73 = scmp.eq.s32.totalorder %s19, 0
      %p74 = por %p72, %p73
      %s75 = ssub.s32 %s20, %s46
      %s76 = ssub.s32 %s22, %s38
      %s77 = sor.u32 %s75, %s76
      %p78 = scmp.eq.s32.totalorder %s77, 0
      %s80 = sadd.s32 %s79, 1
      %s81 = scalar_select %p78, %s79, %s80
      %p84 = pneg %p78
      %p85 = scmp.eq.s32.totalorder %s13, 1
      %p86 = por %p84, %p85
      %p87 = scmp.ne.s32.totalorder %s79, %s82
      %p88 = scmp.eq.s32.totalorder %s13, 0
      %p89 = por %p87, %p88
      %p90 = scmp.ne.s32.totalorder %s79, %s82
      %p91 = scmp.eq.s32.totalorder %s18, 1
      %p92 = por %p90, %p91
      %p93 = scmp.ne.s32.totalorder %s82, %s83
      %p94 = scmp.eq.s32.totalorder %s18, 0
      %p95 = por %p93, %p94
      %p96 = scmp.ne.s32.totalorder %s82, %s83
      %p97 = scmp.eq.s32.totalorder %s19, 1
      %p98 = por %p96, %p97
      %p100 = scmp.ne.s32.totalorder %s83, %s99
      %p101 = scmp.eq.s32.totalorder %s19, 0
      %p102 = por %p100, %p101
      %s104 = sadd.s32 %s103, 1
      %p107 = scmp.eq.s32.totalorder %s13, 1
      %p108 = scmp.ne.s32.totalorder %s103, %s105
      %p109 = scmp.eq.s32.totalorder %s13, 0
      %p110 = por %p108, %p109
      %p111 = scmp.ne.s32.totalorder %s103, %s105
      %p112 = scmp.eq.s32.totalorder %s18, 1
      %p113 = por %p111, %p112
      %p114 = scmp.ne.s32.totalorder %s105, %s106
      %p115 = scmp.eq.s32.totalorder %s18, 0
      %p116 = por %p114, %p115
      %p117 = scmp.ne.s32.totalorder %s105, %s106
      %p118 = scmp.eq.s32.totalorder %s19, 1
      %p119 = por %p117, %p118
      %p121 = scmp.ne.s32.totalorder %s106, %s120
      %p122 = scmp.eq.s32.totalorder %s19, 0
      %p123 = por %p121, %p122
      %s125 = sadd.s32 %s124, 1
      %p128 = scmp.eq.s32.totalorder %s13, 1
      %p129 = scmp.ne.s32.totalorder %s124, %s126
      %p130 = scmp.eq.s32.totalorder %s13, 0
      %p131 = por %p129, %p130
      %p132 = scmp.ne.s32.totalorder %s124, %s126
      %p133 = scmp.eq.s32.totalorder %s18, 1
      %p134 = por %p132, %p133
      %p135 = scmp.ne.s32.totalorder %s126, %s127
      %p136 = scmp.eq.s32.totalorder %s18, 0
      %p137 = por %p135, %p136
      %p138 = scmp.ne.s32.totalorder %s126, %s127
      %p139 = scmp.eq.s32.totalorder %s19, 1
      %p140 = por %p138, %p139
      %p142 = scmp.ne.s32.totalorder %s127, %s141
      %p143 = scmp.eq.s32.totalorder %s19, 0
      %p144 = por %p142, %p143
      %s145 = ssub.s32 %s20, %s46
      %s146 = ssub.s32 %s21, %s42
      %s147 = sor.u32 %s145, %s146
      %s148 = ssub.s32 %s22, %s38
      %s149 = sor.u32 %s147, %s148
      %s150 = ssub.s32 %s23, %s34
      %s151 = sor.u32 %s149, %s150
      %p152 = scmp.eq.s32.totalorder %s151, 0
      %s154 = sadd.s32 %s153, 1
      %s155 = scalar_select %p152, %s153, %s154
      %p158 = pneg %p152
      %p159 = scmp.eq.s32.totalorder %s13, 1
      %p160 = por %p158, %p159
      %p161 = scmp.ne.s32.totalorder %s153, %s156
      %p162 = scmp.eq.s32.totalorder %s13, 0
      %p163 = por %p161, %p162
      %p164 = scmp.ne.s32.totalorder %s153, %s156
      %p165 = scmp.eq.s32.totalorder %s18, 1
      %p166 = por %p164, %p165
      %p167 = scmp.ne.s32.totalorder %s156, %s157
      %p168 = scmp.eq.s32.totalorder %s18, 0
      %p169 = por %p167, %p168
      %p170 = scmp.ne.s32.totalorder %s156, %s157
      %p171 = scmp.eq.s32.totalorder %s19, 1
      %p172 = por %p170, %p171
      %p174 = scmp.ne.s32.totalorder %s157, %s173
      %p175 = scmp.eq.s32.totalorder %s19, 0
      %p176 = por %p174, %p175
      %p177 = scmp.le.s32.totalorder 1, %s13
      %p178 = scmp.lt.s32.totalorder %s13, 3
      %p179 = pnand %p177, %p178
      %p180 = pneg %p179
      // Predicated region
      $region9: #{joint_net_pallas.1} parent=5 // pred_check
        _
      $region10: #{joint_net_pallas.1} parent=5 // pred_check_branch
        %182 = sbr.rel (%p179) target = $region12
      $region11: #{joint_net_pallas.1} parent=5 // pred_region
        %s183 = ssub.s32 %s13, 1
        // Predicated region
        $region13: #{joint_net_pallas.1} parent=11 // pred_check
          %p184 = pneg %p116
        $region14: #{joint_net_pallas.1} parent=11 // pred_check_branch
          %186 = sbr.rel (%p184) target = $region16
        $region15: #{joint_net_pallas.1} parent=11 // pred_region
          _
        $region16: #{joint_net_pallas.1} parent=11 // pred_fallthru
          _
        // Predicated region
        $region17: #{joint_net_pallas.1} parent=11 // pred_check
          %p187 = pneg %p137
        $region18: #{joint_net_pallas.1} parent=11 // pred_check_branch
          %189 = sbr.rel (%p187) target = $region20
        $region19: #{joint_net_pallas.1} parent=11 // pred_region
          _
        $region20: #{joint_net_pallas.1} parent=11 // pred_fallthru
          _
      $region12: #{joint_net_pallas.1} parent=5 // pred_fallthru
        _
      %p190 = scmp.lt.s32.totalorder %s13, 2
      // Predicated region
      $region21: #{joint_net_pallas.1} parent=5 // pred_check
        %p191 = pneg %p190
      $region22: #{joint_net_pallas.1} parent=5 // pred_check_branch
        %193 = sbr.rel (%p191) target = $region24
      $region23: #{joint_net_pallas.1} parent=5 // pred_region
        // Predicated region
        $region25: #{joint_net_pallas.1} parent=23 // pred_check
          %p194 = pneg %p61
        $region26: #{joint_net_pallas.1} parent=23 // pred_check_branch
          %196 = sbr.rel (%p194) target = $region28
        $region27: #{joint_net_pallas.1} parent=23 // pred_region
          %p197 = scmp.lt.s32.totalorder %s20, 1
          %s198 = scalar_select %p197, %s20, 1
          %p199 = scmp.lt.s32.totalorder %s21, 0
          %s200 = scalar_select %p199, %s21, 0
          %s201 = sadd.s32 %s200, %s198
          %s202 = smul.addr %s201, 4
          %s203 = scalar_lea.vmem %s0, %s202
        $region28: #{joint_net_pallas.1} parent=23 // pred_fallthru
          _
        // Predicated region
        $region29: #{joint_net_pallas.1} parent=23 // pred_check
          %p204 = pneg %p89
        $region30: #{joint_net_pallas.1} parent=23 // pred_check_branch
          %206 = sbr.rel (%p204) target = $region32
        $region31: #{joint_net_pallas.1} parent=23 // pred_region
          %p207 = scmp.lt.s32.totalorder %s20, 1
          %s208 = scalar_select %p207, %s20, 1
          %p209 = scmp.lt.s32.totalorder %s22, 0
          %s210 = scalar_select %p209, %s22, 0
          %s211 = sadd.s32 %s210, %s208
          %s212 = smul.addr %s211, 4
          %s213 = scalar_lea.vmem %s1, %s212
        $region32: #{joint_net_pallas.1} parent=23 // pred_fallthru
          _
      $region24: #{joint_net_pallas.1} parent=5 // pred_fallthru
        _
      %p214 = scmp.le.s32.totalorder 1, %s13
      %p215 = scmp.lt.s32.totalorder %s13, 3
      %p216 = pnand %p214, %p215
      %p217 = pneg %p216
      // Predicated region
      $region33: #{joint_net_pallas.1} parent=5 // pred_check
        _
      $region34: #{joint_net_pallas.1} parent=5 // pred_check_branch
        %219 = sbr.rel (%p216) target = $region36
      $region35: #{joint_net_pallas.1} parent=5 // pred_region
        %s220 = ssub.s32 %s13, 1
        %p221 = scmp.lt.s32.totalorder %s24, 1
        %s222 = scalar_select %p221, %s24, 1
        %p223 = scmp.lt.s32.totalorder %s25, 0
        %s224 = scalar_select %p223, %s25, 0
        %s225 = sadd.s32 %s224, %s222
        %s226 = smul.addr %s225, 4
        %s227 = scalar_lea.vmem %s0, %s226
        %p228 = pneg %p67
        %p229 = pneg %p64
        %p230 = scmp.lt.s32.totalorder %s24, 1
        %s231 = scalar_select %p230, %s24, 1
        %p232 = scmp.lt.s32.totalorder %s26, 0
        %s233 = scalar_select %p232, %s26, 0
        %s234 = sadd.s32 %s233, %s231
        %s235 = smul.addr %s234, 4
        %s236 = scalar_lea.vmem %s1, %s235
        %p237 = pneg %p95
        %p238 = pneg %p92
        %p239 = pneg %p116
        %p240 = pneg %p113
        %p241 = pneg %p137
        %p242 = pneg %p134
        %p243 = pneg %p169
        %p244 = pneg %p166
        %s245 = sand.u32 %s156, 1
        %s246 = scalar_lea.sflag [#allocation4], %s245
        %s247 = sand.u32 %s156, 1
        %s248 = smul.addr %s247, 32
        %s249 = scalar_lea.vmem [#allocation3], %s248
        %p250 = scmp.lt.s32.totalorder %s24, 1
        %s251 = scalar_select %p250, %s24, 1
        %p252 = scmp.lt.s32.totalorder %s25, 0
        %s253 = scalar_select %p252, %s25, 0
        %s254 = sadd.s32 %s253, %s251
        %s255 = smul.addr %s254, 4
        %s256 = scalar_lea.vmem %s0, %s255
        %p257 = scmp.lt.s32.totalorder %s24, 1
        %s258 = scalar_select %p257, %s24, 1
        %p259 = scmp.lt.s32.totalorder %s26, 0
        %s260 = scalar_select %p259, %s26, 0
        %s261 = sadd.s32 %s260, %s258
        %s262 = smul.addr %s261, 4
        %s263 = scalar_lea.vmem %s1, %s262
        %s264 = smul.u32 8, %s25
        %p266 = scmp.eq.s32.totalorder %s27, 0
        // Predicated region
        $region37: #{joint_net_pallas.1} parent=35 // pred_check
          %p267 = pneg %p266
        $region38: #{joint_net_pallas.1} parent=35 // pred_check_branch
          %269 = sbr.rel (%p267) target = $region40
        $region39: #{joint_net_pallas.1} parent=35 // pred_region
          %v270 = vld [vmem:[%s256] sm:$0xf]
          %v271 = vunpack.c.l.bf16 %v270
          %v272 = vld [vmem:[%s263] sm:$0xf]
          %v273 = vunpack.c.l.bf16 %v272
          %v275 = vrot.slane %v271, 1
          %v276 = vrot.slane %v271, 2
          %v277 = vrot.slane %v271, 3
          %v278 = vrot.slane %v271, 4
          %v279 = vrot.slane %v271, 5
          %v280 = vrot.slane %v271, 6
          %v281 = vrot.slane %v271, 7
          %v282 = vperm.slane %v271, 0
          %v283 = vperm.slane %v275, 0
          %v284 = vperm.slane %v276, 0
          %v285 = vperm.slane %v277, 0
          %v286 = vperm.slane %v278, 0
          %v287 = vperm.slane %v279, 0
          %v288 = vperm.slane %v280, 0
          %v289 = vperm.slane %v281, 0
          %v298 = vadd.f32 %v282, %v273
          %v299 = vadd.f32 %v283, %v273
          %v300 = vadd.f32 %v284, %v273
          %v301 = vadd.f32 %v285, %v273
          %v302 = vadd.f32 %v286, %v273
          %v303 = vadd.f32 %v287, %v273
          %v304 = vadd.f32 %v288, %v273
          %v305 = vadd.f32 %v289, %v273
          %v306 = vtanh.pop %v298
          %v307 = vtanh.pop %v299
          %v308 = vtanh.pop %v300
          %v309 = vtanh.pop %v301
          %v310 = vtanh.pop %v302
          %v311 = vtanh.pop %v303
          %v312 = vtanh.pop %v304
          %v313 = vtanh.pop %v305
          %v314 = vpack.c.bf16 %v306, %v306
          %v315 = vpack.c.bf16 %v307, %v307
          %v316 = vpack.c.bf16 %v308, %v308
          %v317 = vpack.c.bf16 %v309, %v309
          %v318 = vpack.c.bf16 %v310, %v310
          %v319 = vpack.c.bf16 %v311, %v311
          %v320 = vpack.c.bf16 %v312, %v312
          %v321 = vpack.c.bf16 %v313, %v313
          %vm322 = vcmask 519168
          %323 = vst.msk [vmem:[#allocation2] sm:$0xf] %vm322, %v314
          %324 = vst.msk [vmem:[#allocation2 + $0x4] sm:$0xf] %vm322, %v315
          %325 = vst.msk [vmem:[#allocation2 + $0x8] sm:$0xf] %vm322, %v316
          %326 = vst.msk [vmem:[#allocation2 + $0xc] sm:$0xf] %vm322, %v317
          %327 = vst.msk [vmem:[#allocation2 + $0x10] sm:$0xf] %vm322, %v318
          %328 = vst.msk [vmem:[#allocation2 + $0x14] sm:$0xf] %vm322, %v319
          %329 = vst.msk [vmem:[#allocation2 + $0x18] sm:$0xf] %vm322, %v320
          %330 = vst.msk [vmem:[#allocation2 + $0x1c] sm:$0xf] %vm322, %v321
        $region40: #{joint_net_pallas.1} parent=35 // pred_fallthru
          _
        %v331 = vld [vmem:[%s2] sm:$0xf]
        %v332 = vld [vmem:[%s2 + $0x4] sm:$0xf]
        %v333 = vld [vmem:[%s2 + $0x8] sm:$0xf]
        %v334 = vld [vmem:[%s2 + $0xc] sm:$0xf]
        %v335 = vld [vmem:[%s2 + $0x10] sm:$0xf]
        %v336 = vld [vmem:[%s2 + $0x14] sm:$0xf]
        %v337 = vld [vmem:[%s2 + $0x18] sm:$0xf]
        %v338 = vld [vmem:[%s2 + $0x1c] sm:$0xf]
        %v339 = vld [vmem:[%s3] sm:$0x1]
        %v340 = vld [vmem:[#allocation2] sm:$0xf]
        %v341 = vld [vmem:[#allocation2 + $0x4] sm:$0xf]
        %v342 = vld [vmem:[#allocation2 + $0x8] sm:$0xf]
        %v343 = vld [vmem:[#allocation2 + $0xc] sm:$0xf]
        %v344 = vld [vmem:[#allocation2 + $0x10] sm:$0xf]
        %v345 = vld [vmem:[#allocation2 + $0x14] sm:$0xf]
        %v346 = vld [vmem:[#allocation2 + $0x18] sm:$0xf]
        %v347 = vld [vmem:[#allocation2 + $0x1c] sm:$0xf]
        %v349 = vperm.slane %v339, 0
        %v359 = vunpack.c.l.b16 %v340
        %v360 = vunpack.c.l.b16 %v341
        %v361 = vunpack.c.l.b16 %v342
        %v362 = vunpack.c.l.b16 %v343
        %v363 = vunpack.c.l.b16 %v344
        %v364 = vunpack.c.l.b16 %v345
        %v365 = vunpack.c.l.b16 %v346
        %v366 = vunpack.c.l.b16 %v347
        %v367 = vpack.c.b16 %v360, %v359
        %v368 = vpack.c.b16 %v362, %v361
        %v369 = vpack.c.b16 %v364, %v363
        %v370 = vpack.c.b16 %v366, %v365
        %v379 = vunpack.c.l.b16 %v331
        %v380 = vunpack.c.l.b16 %v332
        %v381 = vunpack.c.l.b16 %v333
        %v382 = vunpack.c.l.b16 %v334
        %v383 = vunpack.c.l.b16 %v335
        %v384 = vunpack.c.l.b16 %v336
        %v385 = vunpack.c.l.b16 %v337
        %v386 = vunpack.c.l.b16 %v338
        %v387 = vpack.c.b16 %v380, %v379
        %v388 = vpack.c.b16 %v382, %v381
        %v389 = vpack.c.b16 %v384, %v383
        %v390 = vpack.c.b16 %v386, %v385
        %vm395 = vcmask 523264
        %v397 = vsel %vm395, %v367, 0
        %v400 = vsel %vm395, %v368, 0
        %v403 = vsel %vm395, %v369, 0
        %v406 = vsel %vm395, %v370, 0
        %408 = vmatpush.bf16.msra.mxu0 0
        %409 = vmatpush.bf16.msra.mxu0 0
        %410 = vmatpush.bf16.msra.mxu0 0
        %411 = vmatpush.bf16.msra.mxu0 0
        %412 = vmatpush.bf16.msra.mxu0 %v390
        %413 = vmatpush.bf16.msra.mxu0 %v389
        %414 = vmatpush.bf16.msra.mxu0 %v388
        %415 = vmatpush.bf16.msra.mxu0 %v387
        %416 = vmatmul.bf16.gmra.mxu0 %v397
        %v417 = vpop.f32.mrf.mxu0
        %v418 = vadd.f32 %v349, %v417
        %v419 = vpop.f32.mrf.mxu0
        %v420 = vadd.f32 %v349, %v419
        %421 = vmatmul.bf16.gmra.mxu0 %v400
        %v422 = vpop.f32.mrf.mxu0
        %v423 = vadd.f32 %v349, %v422
        %v424 = vpop.f32.mrf.mxu0
        %v425 = vadd.f32 %v349, %v424
        %426 = vmatmul.bf16.gmra.mxu0 %v403
        %v427 = vpop.f32.mrf.mxu0
        %v428 = vadd.f32 %v349, %v427
        %v429 = vpop.f32.mrf.mxu0
        %v430 = vadd.f32 %v349, %v429
        %431 = vmatmul.bf16.gmra.mxu0 %v406
        %v432 = vpop.f32.mrf.mxu0
        %v433 = vadd.f32 %v349, %v432
        %v434 = vpop.f32.mrf.mxu0
        %v435 = vadd.f32 %v349, %v434
        %436 = vdwg.mxu0
        %v437 = vpack.c.bf16 %v418, %v418
        %v438 = vpack.c.bf16 %v420, %v420
        %v439 = vpack.c.bf16 %v423, %v423
        %v440 = vpack.c.bf16 %v425, %v425
        %v441 = vpack.c.bf16 %v428, %v428
        %v442 = vpack.c.bf16 %v430, %v430
        %v443 = vpack.c.bf16 %v433, %v433
        %v444 = vpack.c.bf16 %v435, %v435
        %445 = vst [vmem:[%s249] sm:$0xf] %v437
        %446 = vst [vmem:[%s249 + $0x4] sm:$0xf] %v438
        %447 = vst [vmem:[%s249 + $0x8] sm:$0xf] %v439
        %448 = vst [vmem:[%s249 + $0xc] sm:$0xf] %v440
        %449 = vst [vmem:[%s249 + $0x10] sm:$0xf] %v441
        %450 = vst [vmem:[%s249 + $0x14] sm:$0xf] %v442
        %451 = vst [vmem:[%s249 + $0x18] sm:$0xf] %v443
        %452 = vst [vmem:[%s249 + $0x1c] sm:$0xf] %v444
        %s453 = sand.u32 %s156, 1
        %s454 = scalar_lea.sflag [#allocation4], %s453
        %s455 = sand.u32 %s156, 1
        %s456 = smul.addr %s455, 32
        %s457 = scalar_lea.vmem [#allocation3], %s456
        // Predicated region
        $region41: #{joint_net_pallas.1} parent=35 // pred_check
          %p458 = pneg %p166
        $region42: #{joint_net_pallas.1} parent=35 // pred_check_branch
          %460 = sbr.rel (%p458) target = $region44
        $region43: #{joint_net_pallas.1} parent=35 // pred_region
          %s461 = smul.u32 8, %s25
          %463 = vsyncadd %s454, 0
          %s464 = sadd.s32 %s27, %s26
          %s465 = sadd.s32 %s464, %s461
          %s466 = smul.addr %s24, 8
          %s467 = sadd.s32 %s465, %s466
          %s468 = smul.addr %s467, 4
          %s469 = scalar_lea.hbm %s4, %s468
          %s470 = sshll.u32 %s457, 4
          %s471 = int_to_ptr.vmem [resolvable:$true] %s470
          %s472 = sshll.u32 %s469, 4
          %s473 = int_to_ptr.hbm [resolvable:$true] %s472
          %478 = dma.vmem_to_hbm [thread:$0]  %s471, 512, %s473, %s454, 64, 64, 4
        $region44: #{joint_net_pallas.1} parent=35 // pred_fallthru
          _
      $region36: #{joint_net_pallas.1} parent=5 // pred_fallthru
        _
      %p479 = scmp.le.s32.totalorder 2, %s13
      // Predicated region
      $region45: #{joint_net_pallas.1} parent=5 // pred_check
        %p480 = pneg %p479
      $region46: #{joint_net_pallas.1} parent=5 // pred_check_branch
        %482 = sbr.rel (%p480) target = $region48
      $region47: #{joint_net_pallas.1} parent=5 // pred_region
        %s483 = ssub.s32 %s13, 2
        // Predicated region
        $region49: #{joint_net_pallas.1} parent=47 // pred_check
          %p484 = pneg %p172
        $region50: #{joint_net_pallas.1} parent=47 // pred_check_branch
          %486 = sbr.rel (%p484) target = $region52
        $region51: #{joint_net_pallas.1} parent=47 // pred_region
          %s487 = sand.u32 %s157, 1
          %s488 = scalar_lea.sflag [#allocation4], %s487
          %s489 = sand.u32 %s157, 1
          %s490 = smul.addr %s489, 32
          %s491 = scalar_lea.vmem [#allocation3], %s490
          %493 = dma.done %s488, 512
        $region52: #{joint_net_pallas.1} parent=47 // pred_fallthru
          _
      $region48: #{joint_net_pallas.1} parent=5 // pred_fallthru
        _
    $region6: #{joint_net_pallas.1} parent=1 // loop_footer
      %s17 = sadd.s32 1, %s13
    $region7: #{joint_net_pallas.1} parent=1 // loop_footer_branch
      %12 = sbr.rel target = $region3
    $region8: #{joint_net_pallas.1} parent=1 // loop_exit
      _
    %494 = vsyncpa [#allocation4], 1
    %s495 = scalar_lea.sflag [#allocation4], 1
    %496 = vsyncpa %s495, 1

</llo_original>
